<compile_context>
chip_gen: v7x
topology: tpu7x:2x2x1
jax: 0.10.0
libtpu: 0.0.40
codegen_flags: <defaults>
</compile_context>

<pallas_src>
import functools
import math

import jax
import jax.numpy as jnp
from jax.experimental import pallas as pl
from jax.experimental.pallas import tpu as pltpu


# ----------------------------- in-kernel helpers -----------------------------

def _gelu(x):
    # exact (erf-based) gelu, matching transformers.activations.gelu
    return 0.5 * x * (1.0 + jax.lax.erf(x * (1.0 / math.sqrt(2.0))))


# ------------------------------- Pallas kernel -------------------------------

def mlm_head_kernel(x_ref, wt_ref, bt_ref, g_ref, b_ref, wd_ref, bd_ref,
                    out_ref, h_scratch, *, eps):
    """One (row-tile, vocab-tile) grid step of the MLM head.

    x_ref:  (TM, H_in) bf16      wt_ref: (H_in, H) bf16    bt/g/b: (1, H) f32
    wd_ref: (H, TV)   bf16       bd_ref: (1, TV) f32
    out_ref:(TM, TV)  out_dtype  h_scratch: (TM, H) bf16 (persists across j)
    """
    j = pl.program_id(1)

    # BertPredictionHeadTransform: dense -> gelu -> LayerNorm, computed once
    # per row tile (vocab axis is the inner "arbitrary" axis) and cached.
    @pl.when(j == 0)
    def _():
        h = jnp.dot(x_ref[...], wt_ref[...],
                    preferred_element_type=jnp.float32) + bt_ref[...]
        h = _gelu(h)
        mean = jnp.mean(h, axis=-1, keepdims=True)
        var = jnp.mean(jnp.square(h - mean), axis=-1, keepdims=True)
        h = (h - mean) * jax.lax.rsqrt(var + eps)
        h = h * g_ref[...] + b_ref[...]
        h_scratch[...] = h.astype(h_scratch.dtype)

    # BertLMPredictionHead.decoder: (TM, H) @ (H, TV) + bias (f32 accumulate).
    scores = jnp.dot(h_scratch[...], wd_ref[...],
                     preferred_element_type=jnp.float32)
    out_ref[...] = (scores + bd_ref[...]).astype(out_ref.dtype)


# ------------------------------- JAX wrapper ----------------------------------

def _round_up(x, m):
    return ((x + m - 1) // m) * m


def _pick_row_tile(m, target=1024):
    """MXU-friendly row tile: prefer multiples of 256 dividing m, else pad m."""
    if m <= target:
        return max(16, _round_up(m, 16))          # bf16 sublane minimum is 16
    for t in range(target, 0, -256):              # MXU-edge aligned, divides m
        if m % t == 0:
            return t
    for t in range(target, 0, -16):               # any 16-multiple dividing m
        if m % t == 0:
            return t
    return target                                 # m gets zero-padded instead


def bert_only_mlm_head_pallas(sequence_output, features, params, *,
                              eps=1e-12, tm=None, tv=None, out_dtype=None):
    """BertOnlyMLMHead.forward(sequence_output, features) -> (scores, None)."""
    del features  # unused by BertOnlyMLMHead.forward (second output is None)

    B, S, H_in = sequence_output.shape
    H = params["wt"].shape[1]
    V = params["wd"].shape[1]
    M = B * S
    out_dtype = sequence_output.dtype if out_dtype is None else out_dtype

    # ------------------------------ tile selection ------------------------------
    if tm is None:
        tm = _pick_row_tile(M, target=1024)
        # Keep >= 2 row tiles so the "parallel" axis can feed both v7x cores.
        while _round_up(M, tm) // tm < 2 and tm >= 512 and tm % 2 == 0:
            tm //= 2
    if tv is None:
        tv = min(1024, _round_up(V, 256))         # lane-dense, MXU-edge multiple
    Mp = _round_up(M, tm)                         # padded row count
    Vp = _round_up(V, tv)                         # padded vocab (30522 -> 30720)

    # -------------------------- operand preparation -----------------------------
    # bf16 operands for the MXU (converted once); biases / LN params stay f32.
    x2 = sequence_output.reshape(M, H_in).astype(jnp.bfloat16)
    if Mp != M:
        x2 = jnp.pad(x2, ((0, Mp - M), (0, 0)))
    wt = params["wt"].astype(jnp.bfloat16)
    bt = params["bt"].reshape(1, H).astype(jnp.float32)
    g = params["gamma"].reshape(1, H).astype(jnp.float32)
    b = params["beta"].reshape(1, H).astype(jnp.float32)
    wd = params["wd"].astype(jnp.bfloat16)
    bd = params["bd"].reshape(1, V).astype(jnp.float32)
    if Vp != V:
        wd = jnp.pad(wd, ((0, 0), (0, Vp - V)))   # zero columns -> zero logits
        bd = jnp.pad(bd, ((0, 0), (0, Vp - V)))

    # ------------------------------ VMEM budget ---------------------------------
    out_bytes = jnp.dtype(out_dtype).itemsize
    bf16, f32 = 2, 4
    vmem_est = (2 * tm * H_in * bf16      # x row tile (double buffered)
                + 2 * H_in * H * bf16     # transform weight (constant index)
                + 2 * 3 * H * f32         # bt / gamma / beta
                + 2 * H * tv * bf16       # decoder weight column tile
                + 2 * tv * f32            # decoder bias tile
                + 2 * tm * tv * out_bytes # output tile
                + tm * H * bf16)          # transform scratch
    try:
        vmem_cap = int(pltpu.get_tpu_info().vmem_capacity_bytes)
    except Exception:
        vmem_cap = 64 * 1024 * 1024       # conservative (v7x per-core)
    vmem_limit = int(max(4 * 1024 * 1024,
                         min(vmem_cap - 8 * 1024 * 1024, 2 * vmem_est)))

    kernel = functools.partial(mlm_head_kernel, eps=eps)

    out = pl.pallas_call(
        kernel,
        out_shape=jax.ShapeDtypeStruct((Mp, Vp), out_dtype),
        grid_spec=pltpu.PrefetchScalarGridSpec(
            num_scalar_prefetch=0,
            grid=(Mp // tm, Vp // tv),
            in_specs=[
                pl.BlockSpec((tm, H_in), lambda i, j: (i, 0)),   # x row tile
                pl.BlockSpec((H_in, H), lambda i, j: (0, 0)),    # wt (constant)
                pl.BlockSpec((1, H), lambda i, j: (0, 0)),       # bt
                pl.BlockSpec((1, H), lambda i, j: (0, 0)),       # gamma
                pl.BlockSpec((1, H), lambda i, j: (0, 0)),       # beta
                pl.BlockSpec((H, tv), lambda i, j: (0, j)),      # wd column tile
                pl.BlockSpec((1, tv), lambda i, j: (0, j)),      # bd tile
            ],
            out_specs=pl.BlockSpec((tm, tv), lambda i, j: (i, j)),
            scratch_shapes=[pltpu.VMEM((tm, H), jnp.bfloat16)],
        ),
        compiler_params=pltpu.CompilerParams(
            dimension_semantics=("parallel", "arbitrary"),
            vmem_limit_bytes=vmem_limit),
    )(x2, wt, bt, g, b, wd, bd)

    prediction_scores = out[:M, :V].reshape(B, S, V)
    return prediction_scores, None


# ----------------------------- pure-JAX reference ----------------------------

def bert_only_mlm_head_ref(sequence_output, features, params, *, eps=1e-12):
    del features
    x = sequence_output.astype(jnp.float32)
    h = x @ params["wt"] + params["bt"].reshape(1, -1)
    h = _gelu(h)
    mean = jnp.mean(h, axis=-1, keepdims=True)
    var = jnp.mean(jnp.square(h - mean), axis=-1, keepdims=True)
    h = (h - mean) * jax.lax.rsqrt(var + eps)
    h = h * params["gamma"].reshape(1, -1) + params["beta"].reshape(1, -1)
    scores = h @ params["wd"] + params["bd"].reshape(1, -1)
    return scores, None


# ------------------------------------ main ------------------------------------

if __name__ == "__main__":
    # small config (feature_encoder=False -> input_hidden_size == hidden_size)
    # V=250 has no 128-multiple divisor -> exercises the vocab-padding path.
    B, S, H, V = 2, 16, 32, 250
    FEAT_LEN = 4
    EPS = 1e-12

    key = jax.random.PRNGKey(0)
    kx, kf, kwt, kbt, kg, kb, kwd, kbd = jax.random.split(key, 8)

    sequence_output = jax.random.normal(kx, (B, S, H), jnp.float32)
    features = jax.random.normal(kf, (B, FEAT_LEN), jnp.float32)  # ignored

    params = dict(
        wt=jax.random.normal(kwt, (H, H), jnp.float32) * 0.02,
        bt=jax.random.normal(kbt, (1, H), jnp.float32) * 0.02,
        gamma=1.0 + jax.random.normal(kg, (1, H), jnp.float32) * 0.02,
        beta=jax.random.normal(kb, (1, H), jnp.float32) * 0.02,
        wd=jax.random.normal(kwd, (H, V), jnp.float32) * 0.02,
        bd=jax.random.normal(kbd, (1, V), jnp.float32) * 0.02,
    )

    # tm=16 (bf16 sublane minimum), tv=128 -> (2, 2) grid with V padded 250->256.
    scores, none_out = bert_only_mlm_head_pallas(
        sequence_output, features, params, eps=EPS, tm=16, tv=128)
    scores = jax.block_until_ready(scores)

    ref, _ = bert_only_mlm_head_ref(sequence_output, features, params, eps=EPS)
    ref = jax.block_until_ready(ref)

    assert none_out is None
    assert scores.shape == (B, S, V) and scores.dtype == jnp.float32
    assert jnp.allclose(scores, ref, rtol=2e-2, atol=2e-2), "mismatch vs reference"

    # Also exercise the default (auto-tile) path once.
    scores2, _ = bert_only_mlm_head_pallas(sequence_output, features, params, eps=EPS)
    scores2 = jax.block_until_ready(scores2)
    assert scores2.shape == (B, S, V)
    assert jnp.allclose(scores2, ref, rtol=2e-2, atol=2e-2), "mismatch (auto tiles)"

    print("KERNEL_OK")
</pallas_src>

<mosaic_0001>
module attributes {stable_mosaic.version = 11 : i64} {
  func.func @mlm_head_kernel(%arg0: i32, %arg1: i32, %arg2: memref<16x32xbf16, #tpu.memory_space<vmem>>, %arg3: memref<32x32xbf16, #tpu.memory_space<vmem>>, %arg4: memref<1x32xf32, #tpu.memory_space<vmem>>, %arg5: memref<1x32xf32, #tpu.memory_space<vmem>>, %arg6: memref<1x32xf32, #tpu.memory_space<vmem>>, %arg7: memref<32x128xbf16, #tpu.memory_space<vmem>>, %arg8: memref<1x128xf32, #tpu.memory_space<vmem>>, %arg9: memref<16x128xf32, #tpu.memory_space<vmem>>, %arg10: memref<16x32xbf16, #tpu.memory_space<vmem>>) attributes {dimension_semantics = [#tpu.dimension_semantics<parallel>, #tpu.dimension_semantics<arbitrary>], iteration_bounds = array<i64: 2, 2>, scalar_prefetch = 0 : i64, scratch_operands = 1 : i64, tpu.core_type = #tpu.core_type<tc>, window_params = [{transform_indices = @transform_0, window_bounds = array<i64: 16, 32>}, {pipeline_mode = #tpu.pipeline_mode<synchronous>, transform_indices = @transform_1, window_bounds = array<i64: 32, 32>}, {pipeline_mode = #tpu.pipeline_mode<synchronous>, transform_indices = @transform_2, window_bounds = array<i64: 1, 32>}, {pipeline_mode = #tpu.pipeline_mode<synchronous>, transform_indices = @transform_3, window_bounds = array<i64: 1, 32>}, {pipeline_mode = #tpu.pipeline_mode<synchronous>, transform_indices = @transform_4, window_bounds = array<i64: 1, 32>}, {transform_indices = @transform_5, window_bounds = array<i64: 32, 128>}, {transform_indices = @transform_6, window_bounds = array<i64: 1, 128>}, {transform_indices = @transform_7, window_bounds = array<i64: 16, 128>}]} {
    %c0_i32 = arith.constant 0 : i32
    %0 = arith.cmpi eq, %arg1, %c0_i32 : i32
    %1 = arith.extui %0 : i1 to i32
    %c0_i32_0 = arith.constant 0 : i32
    %2 = arith.cmpi ne, %1, %c0_i32_0 : i32
    scf.if %2 {
      %c0_8 = arith.constant 0 : index
      %c0_9 = arith.constant 0 : index
      %10 = vector.load %arg2[%c0_8, %c0_9] : memref<16x32xbf16, #tpu.memory_space<vmem>>, vector<16x32xbf16>
      %c0_10 = arith.constant 0 : index
      %c0_11 = arith.constant 0 : index
      %11 = vector.load %arg3[%c0_10, %c0_11] : memref<32x32xbf16, #tpu.memory_space<vmem>>, vector<32x32xbf16>
      %cst_12 = arith.constant dense<0.000000e+00> : vector<16x32xf32>
      %12 = tpu.matmul %10, %11, %cst_12 {dimension_numbers = #tpu.dot_dimension_numbers<[1], [0], [0], [1], [0, 0, 1, 1], [], []>} : vector<16x32xbf16>, vector<32x32xbf16>, vector<16x32xf32> -> vector<16x32xf32>
      %c0_13 = arith.constant 0 : index
      %c0_14 = arith.constant 0 : index
      %13 = vector.load %arg4[%c0_13, %c0_14] : memref<1x32xf32, #tpu.memory_space<vmem>>, vector<1x32xf32>
      %14 = vector.broadcast %13 : vector<1x32xf32> to vector<16x32xf32>
      %15 = arith.addf %12, %14 : vector<16x32xf32>
      %cst_15 = arith.constant 5.000000e-01 : f32
      %16 = vector.broadcast %cst_15 : f32 to vector<16x32xf32>
      %17 = arith.mulf %16, %15 : vector<16x32xf32>
      %cst_16 = arith.constant 0.707106769 : f32
      %18 = vector.broadcast %cst_16 : f32 to vector<16x32xf32>
      %19 = arith.mulf %15, %18 : vector<16x32xf32>
      %20 = math.erf %19 : vector<16x32xf32>
      %cst_17 = arith.constant 1.000000e+00 : f32
      %21 = vector.broadcast %cst_17 : f32 to vector<16x32xf32>
      %22 = arith.addf %21, %20 : vector<16x32xf32>
      %23 = arith.mulf %17, %22 : vector<16x32xf32>
      %cst_18 = arith.constant dense<0.000000e+00> : vector<16xf32>
      %24 = vector.multi_reduction <add>, %23, %cst_18 [1] : vector<16x32xf32> to vector<16xf32>
      %25 = vector.shape_cast %24 : vector<16xf32> to vector<16x1xf32>
      %cst_19 = arith.constant 3.200000e+01 : f32
      %26 = vector.broadcast %cst_19 : f32 to vector<16x1xf32>
      %27 = arith.divf %25, %26 : vector<16x1xf32>
      %28 = vector.broadcast %27 : vector<16x1xf32> to vector<16x32xf32>
      %29 = arith.subf %23, %28 : vector<16x32xf32>
      %30 = arith.mulf %29, %29 : vector<16x32xf32>
      %cst_20 = arith.constant dense<0.000000e+00> : vector<16xf32>
      %31 = vector.multi_reduction <add>, %30, %cst_20 [1] : vector<16x32xf32> to vector<16xf32>
      %32 = vector.shape_cast %31 : vector<16xf32> to vector<16x1xf32>
      %cst_21 = arith.constant 3.200000e+01 : f32
      %33 = vector.broadcast %cst_21 : f32 to vector<16x1xf32>
      %34 = arith.divf %32, %33 : vector<16x1xf32>
      %35 = vector.broadcast %27 : vector<16x1xf32> to vector<16x32xf32>
      %36 = arith.subf %23, %35 : vector<16x32xf32>
      %cst_22 = arith.constant 9.99999996E-13 : f32
      %37 = vector.broadcast %cst_22 : f32 to vector<16x1xf32>
      %38 = arith.addf %34, %37 : vector<16x1xf32>
      %39 = math.rsqrt %38 : vector<16x1xf32>
      %40 = vector.broadcast %39 : vector<16x1xf32> to vector<16x32xf32>
      %41 = arith.mulf %36, %40 : vector<16x32xf32>
      %c0_23 = arith.constant 0 : index
      %c0_24 = arith.constant 0 : index
      %42 = vector.load %arg5[%c0_23, %c0_24] : memref<1x32xf32, #tpu.memory_space<vmem>>, vector<1x32xf32>
      %43 = vector.broadcast %42 : vector<1x32xf32> to vector<16x32xf32>
      %44 = arith.mulf %41, %43 : vector<16x32xf32>
      %c0_25 = arith.constant 0 : index
      %c0_26 = arith.constant 0 : index
      %45 = vector.load %arg6[%c0_25, %c0_26] : memref<1x32xf32, #tpu.memory_space<vmem>>, vector<1x32xf32>
      %46 = vector.broadcast %45 : vector<1x32xf32> to vector<16x32xf32>
      %47 = arith.addf %44, %46 : vector<16x32xf32>
      %48 = arith.truncf %47 : vector<16x32xf32> to vector<16x32xbf16>
      %c0_27 = arith.constant 0 : index
      %c0_28 = arith.constant 0 : index
      %49 = vector.load %arg10[%c0_27, %c0_28] : memref<16x32xbf16, #tpu.memory_space<vmem>>, vector<16x32xbf16>
      tpu.vector_store %arg10[%c0_27, %c0_28], %48 {strides = array<i32>} : memref<16x32xbf16, #tpu.memory_space<vmem>>, vector<16x32xbf16>,
    } else {
    }
    %c0 = arith.constant 0 : index
    %c0_1 = arith.constant 0 : index
    %3 = vector.load %arg10[%c0, %c0_1] : memref<16x32xbf16, #tpu.memory_space<vmem>>, vector<16x32xbf16>
    %c0_2 = arith.constant 0 : index
    %c0_3 = arith.constant 0 : index
    %4 = vector.load %arg7[%c0_2, %c0_3] : memref<32x128xbf16, #tpu.memory_space<vmem>>, vector<32x128xbf16>
    %cst = arith.constant dense<0.000000e+00> : vector<16x128xf32>
    %5 = tpu.matmul %3, %4, %cst {dimension_numbers = #tpu.dot_dimension_numbers<[1], [0], [0], [1], [0, 0, 1, 1], [], []>} : vector<16x32xbf16>, vector<32x128xbf16>, vector<16x128xf32> -> vector<16x128xf32>
    %c0_4 = arith.constant 0 : index
    %c0_5 = arith.constant 0 : index
    %6 = vector.load %arg8[%c0_4, %c0_5] : memref<1x128xf32, #tpu.memory_space<vmem>>, vector<1x128xf32>
    %7 = vector.broadcast %6 : vector<1x128xf32> to vector<16x128xf32>
    %8 = arith.addf %5, %7 : vector<16x128xf32>
    %c0_6 = arith.constant 0 : index
    %c0_7 = arith.constant 0 : index
    %9 = vector.load %arg9[%c0_6, %c0_7] : memref<16x128xf32, #tpu.memory_space<vmem>>, vector<16x128xf32>
    tpu.vector_store %arg9[%c0_6, %c0_7], %8 {strides = array<i32>} : memref<16x128xf32, #tpu.memory_space<vmem>>, vector<16x128xf32>,
    return
  }
  func.func @transform_0(%arg0: i32, %arg1: i32) -> (i32, i32) {
    %c0_i32 = arith.constant 0 : i32
    %c0_i32_0 = arith.constant 0 : i32
    return %arg0, %c0_i32 : i32, i32
  }
  func.func @transform_1(%arg0: i32, %arg1: i32) -> (i32, i32) {
    %c0_i32 = arith.constant 0 : i32
    %c0_i32_0 = arith.constant 0 : i32
    %c0_i32_1 = arith.constant 0 : i32
    return %c0_i32, %c0_i32_0 : i32, i32
  }
  func.func @transform_2(%arg0: i32, %arg1: i32) -> (i32, i32) {
    %c0_i32 = arith.constant 0 : i32
    %c0_i32_0 = arith.constant 0 : i32
    %c0_i32_1 = arith.constant 0 : i32
    return %c0_i32, %c0_i32_0 : i32, i32
  }
  func.func @transform_3(%arg0: i32, %arg1: i32) -> (i32, i32) {
    %c0_i32 = arith.constant 0 : i32
    %c0_i32_0 = arith.constant 0 : i32
    %c0_i32_1 = arith.constant 0 : i32
    return %c0_i32, %c0_i32_0 : i32, i32
  }
  func.func @transform_4(%arg0: i32, %arg1: i32) -> (i32, i32) {
    %c0_i32 = arith.constant 0 : i32
    %c0_i32_0 = arith.constant 0 : i32
    %c0_i32_1 = arith.constant 0 : i32
    return %c0_i32, %c0_i32_0 : i32, i32
  }
  func.func @transform_5(%arg0: i32, %arg1: i32) -> (i32, i32) {
    %c0_i32 = arith.constant 0 : i32
    %c0_i32_0 = arith.constant 0 : i32
    return %c0_i32, %arg1 : i32, i32
  }
  func.func @transform_6(%arg0: i32, %arg1: i32) -> (i32, i32) {
    %c0_i32 = arith.constant 0 : i32
    %c0_i32_0 = arith.constant 0 : i32
    return %c0_i32, %arg1 : i32, i32
  }
  func.func @transform_7(%arg0: i32, %arg1: i32) -> (i32, i32) {
    %c0_i32 = arith.constant 0 : i32
    return %arg0, %arg1 : i32, i32
  }
}

</mosaic_0001>

<llo_original>
// kernel: tpu_custom_call.1
$region0: #{tpu_custom_call.1}
  #allocation0 [shape = 'u32[]', space=smem, size = 0x4, offset = 0x4, fixed_abs, tag = 'smem constant byte address 0x4 - core index']
  #allocation1 [shape = 'u32[144,128]{1,0:T(1,128)}', space=vmem, size = 0x12000, scoped, tag = 'internal scratch']
  #allocation2 [shape = 'bf16[16,32]{1,0:T(16,128)(2,1)}', space=vmem, size = 0x1000, scoped, tag = 'scratch operand']
  %s0 = inlined_call_operand.hbm [shape: bf16[32,32], index: 0, kind: input, shape index: {}]
  %s1 = inlined_call_operand.hbm [shape: bf16[32,32], index: 1, kind: input, shape index: {}]
  %s2 = inlined_call_operand.vmem [shape: f32[1,32], index: 2, kind: input, shape index: {}]
  %s3 = inlined_call_operand.vmem [shape: f32[1,32], index: 3, kind: input, shape index: {}]
  %s4 = inlined_call_operand.vmem [shape: f32[1,32], index: 4, kind: input, shape index: {}]
  %s5 = inlined_call_operand.hbm [shape: bf16[32,256], index: 5, kind: input, shape index: {}]
  %s6 = inlined_call_operand.vmem [shape: f32[1,256], index: 6, kind: input, shape index: {}]
  %s7 = inlined_call_operand.hbm [shape: f32[32,256], index: 7, kind: output, shape index: {}]
  %s8 = sld [smem:[#allocation0]]
  $region77: #{tpu_custom_call.1} parent=0
    _
  %s10 = ssub.s32 1, %s8
  %s11 = scalar_select 0, %s10, %s8
  $region1: #{tpu_custom_call.1} parent=0
    #allocation3 [shape = 'u8[8192]{0}', space=vmem, size = 0x2000, scoped, tag = 'input window, operand 0']
    #allocation4 [shape = 's32[2]{0}', space=sflag, size = 0x8, scoped, tag = 'scoped memory for tpu_custom_call.1']
    #allocation5 [shape = 's32[2]{0}', space=sflag, size = 0x8, scoped, tag = 'scoped memory for tpu_custom_call.1']
    #allocation6 [shape = 'u8[8192]{0}', space=vmem, size = 0x2000, scoped, tag = 'input window, operand 1, single buffered']
    #allocation7 [shape = 's32[1]{0}', space=sflag, size = 0x4, scoped, tag = 'scoped memory for tpu_custom_call.1']
    #allocation8 [shape = 'u8[16384]{0}', space=vmem, size = 0x4000, scoped, tag = 'input window, operand 5']
    #allocation9 [shape = 'u8[16384]{0}', space=vmem, size = 0x4000, scoped, tag = 'output window, operand 0']
    %12 = vsyncpa [#allocation4], 0
    %s13 = scalar_lea.sflag [#allocation4], 1
    %14 = vsyncpa %s13, 0
    %15 = vsyncpa [#allocation7], 0
    %16 = vsyncpa [#allocation5], 0
    %s17 = scalar_lea.sflag [#allocation5], 1
    %18 = vsyncpa %s17, 0
    loop: start=0, step=1, limit=6
    $region2: #{tpu_custom_call.1} parent=1 // loop_pre_header
      _
    $region3: #{tpu_custom_call.1} parent=1 // loop_header
      %s20 = sphi 0, %s24
      %p21 = scmp.ge.s32.totalorder %s20, 6
      %s27 = sphi 0, %s39
      %s28 = sphi 0, %s35
      %s29 = sphi 0, %s27
      %s30 = sphi 0, %s28
      %s31 = sphi 0, %s29
      %s32 = sphi 0, %s30
      %s42 = sphi 0, %s44
      %s45 = sphi 0, %s42
      %s46 = sphi 0, %s45
      %s62 = sphi 0, %s46
      %s66 = sphi 0, %s66
      %s68 = sphi 0, %s66
      %s69 = sphi 0, %s68
      %s83 = sphi 0, %s69
      %s87 = sphi 0, %s87
      %s89 = sphi 0, %s87
      %s90 = sphi 0, %s89
      %s104 = sphi 0, %s90
      %s108 = sphi 0, %s108
      %s110 = sphi 0, %s108
      %s111 = sphi 0, %s110
      %s125 = sphi 0, %s111
      %s129 = sphi 0, %s129
      %s131 = sphi 0, %s129
      %s132 = sphi 0, %s131
      %s146 = sphi 0, %s132
      %s152 = sphi 0, %s154
      %s155 = sphi 0, %s152
      %s156 = sphi 0, %s155
      %s172 = sphi 0, %s156
      %s178 = sphi 0, %s180
      %s181 = sphi 0, %s178
      %s182 = sphi 0, %s181
      %s198 = sphi 0, %s182
      %s206 = sphi 0, %s208
      %s209 = sphi 0, %s206
      %s210 = sphi 0, %s209
      %s226 = sphi 0, %s210
    $region4: #{tpu_custom_call.1} parent=1 // loop_header_branch
      %23 = sbr.rel (%p21) target = $region8
    $region5: #{tpu_custom_call.1} parent=1 // loop_body
      %s25 = ssub.s32 %s20, 1
      %s26 = ssub.s32 %s20, 2
      %s33 = sadd.s32 1, %s28
      %p34 = scmp.ge.s32.totalorder %s33, 2
      %s35 = scalar_select %p34, 0, %s33
      %s36 = sadd.s32 1, %s27
      %s37 = scalar_select %p34, %s36, %s27
      %p38 = scmp.ge.s32.totalorder %s37, 2
      %s39 = scalar_select %p38, 0, %s37
      %s40 = ssub.s32 %s27, %s39
      %p41 = scmp.eq.s32.totalorder %s40, 0
      %s43 = sadd.s32 %s42, 1
      %s44 = scalar_select %p41, %s42, %s43
      %p47 = pneg %p41
      %p48 = scmp.eq.s32.totalorder %s20, 3
      %p49 = por %p47, %p48
      %p50 = scmp.ne.s32.totalorder %s42, %s45
      %p51 = scmp.eq.s32.totalorder %s20, 0
      %p52 = por %p50, %p51
      %p53 = scmp.ne.s32.totalorder %s42, %s45
      %p54 = scmp.eq.s32.totalorder %s25, 3
      %p55 = por %p53, %p54
      %p56 = scmp.ne.s32.totalorder %s45, %s46
      %p57 = scmp.eq.s32.totalorder %s25, 0
      %p58 = por %p56, %p57
      %p59 = scmp.ne.s32.totalorder %s45, %s46
      %p60 = scmp.eq.s32.totalorder %s26, 3
      %p61 = por %p59, %p60
      %p63 = scmp.ne.s32.totalorder %s46, %s62
      %p64 = scmp.eq.s32.totalorder %s26, 0
      %p65 = por %p63, %p64
      %s67 = sadd.s32 %s66, 1
      %p70 = scmp.eq.s32.totalorder %s20, 3
      %p71 = scmp.ne.s32.totalorder %s66, %s68
      %p72 = scmp.eq.s32.totalorder %s20, 0
      %p73 = por %p71, %p72
      %p74 = scmp.ne.s32.totalorder %s66, %s68
      %p75 = scmp.eq.s32.totalorder %s25, 3
      %p76 = por %p74, %p75
      %p77 = scmp.ne.s32.totalorder %s68, %s69
      %p78 = scmp.eq.s32.totalorder %s25, 0
      %p79 = por %p77, %p78
      %p80 = scmp.ne.s32.totalorder %s68, %s69
      %p81 = scmp.eq.s32.totalorder %s26, 3
      %p82 = por %p80, %p81
      %p84 = scmp.ne.s32.totalorder %s69, %s83
      %p85 = scmp.eq.s32.totalorder %s26, 0
      %p86 = por %p84, %p85
      %s88 = sadd.s32 %s87, 1
      %p91 = scmp.eq.s32.totalorder %s20, 3
      %p92 = scmp.ne.s32.totalorder %s87, %s89
      %p93 = scmp.eq.s32.totalorder %s20, 0
      %p94 = por %p92, %p93
      %p95 = scmp.ne.s32.totalorder %s87, %s89
      %p96 = scmp.eq.s32.totalorder %s25, 3
      %p97 = por %p95, %p96
      %p98 = scmp.ne.s32.totalorder %s89, %s90
      %p99 = scmp.eq.s32.totalorder %s25, 0
      %p100 = por %p98, %p99
      %p101 = scmp.ne.s32.totalorder %s89, %s90
      %p102 = scmp.eq.s32.totalorder %s26, 3
      %p103 = por %p101, %p102
      %p105 = scmp.ne.s32.totalorder %s90, %s104
      %p106 = scmp.eq.s32.totalorder %s26, 0
      %p107 = por %p105, %p106
      %s109 = sadd.s32 %s108, 1
      %p112 = scmp.eq.s32.totalorder %s20, 3
      %p113 = scmp.ne.s32.totalorder %s108, %s110
      %p114 = scmp.eq.s32.totalorder %s20, 0
      %p115 = por %p113, %p114
      %p116 = scmp.ne.s32.totalorder %s108, %s110
      %p117 = scmp.eq.s32.totalorder %s25, 3
      %p118 = por %p116, %p117
      %p119 = scmp.ne.s32.totalorder %s110, %s111
      %p120 = scmp.eq.s32.totalorder %s25, 0
      %p121 = por %p119, %p120
      %p122 = scmp.ne.s32.totalorder %s110, %s111
      %p123 = scmp.eq.s32.totalorder %s26, 3
      %p124 = por %p122, %p123
      %p126 = scmp.ne.s32.totalorder %s111, %s125
      %p127 = scmp.eq.s32.totalorder %s26, 0
      %p128 = por %p126, %p127
      %s130 = sadd.s32 %s129, 1
      %p133 = scmp.eq.s32.totalorder %s20, 3
      %p134 = scmp.ne.s32.totalorder %s129, %s131
      %p135 = scmp.eq.s32.totalorder %s20, 0
      %p136 = por %p134, %p135
      %p137 = scmp.ne.s32.totalorder %s129, %s131
      %p138 = scmp.eq.s32.totalorder %s25, 3
      %p139 = por %p137, %p138
      %p140 = scmp.ne.s32.totalorder %s131, %s132
      %p141 = scmp.eq.s32.totalorder %s25, 0
      %p142 = por %p140, %p141
      %p143 = scmp.ne.s32.totalorder %s131, %s132
      %p144 = scmp.eq.s32.totalorder %s26, 3
      %p145 = por %p143, %p144
      %p147 = scmp.ne.s32.totalorder %s132, %s146
      %p148 = scmp.eq.s32.totalorder %s26, 0
      %p149 = por %p147, %p148
      %s150 = ssub.s32 %s28, %s35
      %p151 = scmp.eq.s32.totalorder %s150, 0
      %s153 = sadd.s32 %s152, 1
      %s154 = scalar_select %p151, %s152, %s153
      %p157 = pneg %p151
      %p158 = scmp.eq.s32.totalorder %s20, 3
      %p159 = por %p157, %p158
      %p160 = scmp.ne.s32.totalorder %s152, %s155
      %p161 = scmp.eq.s32.totalorder %s20, 0
      %p162 = por %p160, %p161
      %p163 = scmp.ne.s32.totalorder %s152, %s155
      %p164 = scmp.eq.s32.totalorder %s25, 3
      %p165 = por %p163, %p164
      %p166 = scmp.ne.s32.totalorder %s155, %s156
      %p167 = scmp.eq.s32.totalorder %s25, 0
      %p168 = por %p166, %p167
      %p169 = scmp.ne.s32.totalorder %s155, %s156
      %p170 = scmp.eq.s32.totalorder %s26, 3
      %p171 = por %p169, %p170
      %p173 = scmp.ne.s32.totalorder %s156, %s172
      %p174 = scmp.eq.s32.totalorder %s26, 0
      %p175 = por %p173, %p174
      %s176 = ssub.s32 %s28, %s35
      %p177 = scmp.eq.s32.totalorder %s176, 0
      %s179 = sadd.s32 %s178, 1
      %s180 = scalar_select %p177, %s178, %s179
      %p183 = pneg %p177
      %p184 = scmp.eq.s32.totalorder %s20, 3
      %p185 = por %p183, %p184
      %p186 = scmp.ne.s32.totalorder %s178, %s181
      %p187 = scmp.eq.s32.totalorder %s20, 0
      %p188 = por %p186, %p187
      %p189 = scmp.ne.s32.totalorder %s178, %s181
      %p190 = scmp.eq.s32.totalorder %s25, 3
      %p191 = por %p189, %p190
      %p192 = scmp.ne.s32.totalorder %s181, %s182
      %p193 = scmp.eq.s32.totalorder %s25, 0
      %p194 = por %p192, %p193
      %p195 = scmp.ne.s32.totalorder %s181, %s182
      %p196 = scmp.eq.s32.totalorder %s26, 3
      %p197 = por %p195, %p196
      %p199 = scmp.ne.s32.totalorder %s182, %s198
      %p200 = scmp.eq.s32.totalorder %s26, 0
      %p201 = por %p199, %p200
      %s202 = ssub.s32 %s27, %s39
      %s203 = ssub.s32 %s28, %s35
      %s204 = sor.u32 %s202, %s203
      %p205 = scmp.eq.s32.totalorder %s204, 0
      %s207 = sadd.s32 %s206, 1
      %s208 = scalar_select %p205, %s206, %s207
      %p211 = pneg %p205
      %p212 = scmp.eq.s32.totalorder %s20, 3
      %p213 = por %p211, %p212
      %p214 = scmp.ne.s32.totalorder %s206, %s209
      %p215 = scmp.eq.s32.totalorder %s20, 0
      %p216 = por %p214, %p215
      %p217 = scmp.ne.s32.totalorder %s206, %s209
      %p218 = scmp.eq.s32.totalorder %s25, 3
      %p219 = por %p217, %p218
      %p220 = scmp.ne.s32.totalorder %s209, %s210
      %p221 = scmp.eq.s32.totalorder %s25, 0
      %p222 = por %p220, %p221
      %p223 = scmp.ne.s32.totalorder %s209, %s210
      %p224 = scmp.eq.s32.totalorder %s26, 3
      %p225 = por %p223, %p224
      %p227 = scmp.ne.s32.totalorder %s210, %s226
      %p228 = scmp.eq.s32.totalorder %s26, 0
      %p229 = por %p227, %p228
      %p230 = scmp.le.s32.totalorder 1, %s20
      %p231 = scmp.lt.s32.totalorder %s20, 5
      %p232 = pnand %p230, %p231
      %p233 = pneg %p232
      // Predicated region
      $region9: #{tpu_custom_call.1} parent=5 // pred_check
        _
      $region10: #{tpu_custom_call.1} parent=5 // pred_check_branch
        %235 = sbr.rel (%p232) target = $region12
      $region11: #{tpu_custom_call.1} parent=5 // pred_region
        %s236 = ssub.s32 %s20, 1
        // Predicated region
        $region13: #{tpu_custom_call.1} parent=11 // pred_check
          %p237 = pneg %p79
        $region14: #{tpu_custom_call.1} parent=11 // pred_check_branch
          %239 = sbr.rel (%p237) target = $region16
        $region15: #{tpu_custom_call.1} parent=11 // pred_region
          %s241 = ssub.s32 256, 256
          %242 = vsyncadd [#allocation7], %s241
          %s243 = sshll.u32 [#allocation6], 4
          %s244 = int_to_ptr.vmem [resolvable:$true] %s243
          %249 = dma.hbm_to_vmem [thread:$0]  %s1, 256, %s244, [#allocation7], 64, 64, 4
        $region16: #{tpu_custom_call.1} parent=11 // pred_fallthru
          _
        // Predicated region
        $region17: #{tpu_custom_call.1} parent=11 // pred_check
          %p250 = pneg %p100
        $region18: #{tpu_custom_call.1} parent=11 // pred_check_branch
          %252 = sbr.rel (%p250) target = $region20
        $region19: #{tpu_custom_call.1} parent=11 // pred_region
          _
        $region20: #{tpu_custom_call.1} parent=11 // pred_fallthru
          _
        // Predicated region
        $region21: #{tpu_custom_call.1} parent=11 // pred_check
          %p253 = pneg %p121
        $region22: #{tpu_custom_call.1} parent=11 // pred_check_branch
          %255 = sbr.rel (%p253) target = $region24
        $region23: #{tpu_custom_call.1} parent=11 // pred_region
          _
        $region24: #{tpu_custom_call.1} parent=11 // pred_fallthru
          _
        // Predicated region
        $region25: #{tpu_custom_call.1} parent=11 // pred_check
          %p256 = pneg %p142
        $region26: #{tpu_custom_call.1} parent=11 // pred_check_branch
          %258 = sbr.rel (%p256) target = $region28
        $region27: #{tpu_custom_call.1} parent=11 // pred_region
          _
        $region28: #{tpu_custom_call.1} parent=11 // pred_fallthru
          _
      $region12: #{tpu_custom_call.1} parent=5 // pred_fallthru
        _
      %p259 = scmp.lt.s32.totalorder %s20, 4
      // Predicated region
      $region29: #{tpu_custom_call.1} parent=5 // pred_check
        %p260 = pneg %p259
      $region30: #{tpu_custom_call.1} parent=5 // pred_check_branch
        %262 = sbr.rel (%p260) target = $region32
      $region31: #{tpu_custom_call.1} parent=5 // pred_region
        // Predicated region
        $region33: #{tpu_custom_call.1} parent=31 // pred_check
          %p263 = pneg %p52
        $region34: #{tpu_custom_call.1} parent=31 // pred_check_branch
          %265 = sbr.rel (%p263) target = $region36
        $region35: #{tpu_custom_call.1} parent=31 // pred_region
          %s266 = sand.u32 %s20, 1
          %s267 = scalar_lea.sflag [#allocation4], %s266
          %s268 = sand.u32 %s42, 1
          %s269 = smul.addr %s268, 8
          %s270 = scalar_lea.vmem [#allocation3], %s269
          %s271 = smul.u32 2, %s27
          %s273 = ssub.s32 128, 128
          %274 = vsyncadd %s267, %s273
          %s275 = smul.addr %s271, 64
          %s276 = scalar_lea.hbm %s0, %s275
          %s277 = sshll.u32 %s270, 4
          %s278 = int_to_ptr.vmem [resolvable:$true] %s277
          %283 = dma.hbm_to_vmem [thread:$0]  %s276, 128, %s278, %s267, 64, 64, 4
        $region36: #{tpu_custom_call.1} parent=31 // pred_fallthru
          _
        // Predicated region
        $region37: #{tpu_custom_call.1} parent=31 // pred_check
          %p284 = pneg %p162
        $region38: #{tpu_custom_call.1} parent=31 // pred_check_branch
          %286 = sbr.rel (%p284) target = $region40
        $region39: #{tpu_custom_call.1} parent=31 // pred_region
          %s287 = sand.u32 %s20, 1
          %s288 = scalar_lea.sflag [#allocation4], %s287
          %s289 = sand.u32 %s152, 1
          %s290 = smul.addr %s289, 16
          %s291 = scalar_lea.vmem [#allocation8], %s290
          %s293 = ssub.s32 256, 256
          %294 = vsyncadd %s288, %s293
          %s295 = smul.addr %s28, 64
          %s296 = scalar_lea.hbm %s5, %s295
          %s297 = sshll.u32 %s291, 4
          %s298 = int_to_ptr.vmem [resolvable:$true] %s297
          %303 = dma.hbm_to_vmem [thread:$0]  %s296, 256, %s298, %s288, 128, 64, 4
        $region40: #{tpu_custom_call.1} parent=31 // pred_fallthru
          _
        // Predicated region
        $region41: #{tpu_custom_call.1} parent=31 // pred_check
          %p304 = pneg %p188
        $region42: #{tpu_custom_call.1} parent=31 // pred_check_branch
          %306 = sbr.rel (%p304) target = $region44
        $region43: #{tpu_custom_call.1} parent=31 // pred_region
          %p307 = scmp.lt.s32.totalorder %s28, 1
          %s308 = scalar_select %p307, %s28, 1
          %s309 = scalar_lea.vmem %s6, %s308
        $region44: #{tpu_custom_call.1} parent=31 // pred_fallthru
          _
      $region32: #{tpu_custom_call.1} parent=5 // pred_fallthru
        _
      %p310 = scmp.le.s32.totalorder 1, %s20
      %p311 = scmp.lt.s32.totalorder %s20, 5
      %p312 = pnand %p310, %p311
      %p313 = pneg %p312
      // Predicated region
      $region45: #{tpu_custom_call.1} parent=5 // pred_check
        _
      $region46: #{tpu_custom_call.1} parent=5 // pred_check_branch
        %315 = sbr.rel (%p312) target = $region48
      $region47: #{tpu_custom_call.1} parent=5 // pred_region
        %s316 = ssub.s32 %s20, 1
        %s317 = sand.u32 %s25, 1
        %s318 = scalar_lea.sflag [#allocation4], %s317
        %s319 = sand.u32 %s45, 1
        %s320 = smul.addr %s319, 8
        %s321 = scalar_lea.vmem [#allocation3], %s320
        // Predicated region
        $region49: #{tpu_custom_call.1} parent=47 // pred_check
          %p322 = pneg %p58
        $region50: #{tpu_custom_call.1} parent=47 // pred_check_branch
          %324 = sbr.rel (%p322) target = $region52
        $region51: #{tpu_custom_call.1} parent=47 // pred_region
          %325 = dma.done %s318, 128
        $region52: #{tpu_custom_call.1} parent=47 // pred_fallthru
          _
        // Predicated region
        $region53: #{tpu_custom_call.1} parent=47 // pred_check
          %p326 = pneg %p79
        $region54: #{tpu_custom_call.1} parent=47 // pred_check_branch
          %328 = sbr.rel (%p326) target = $region56
        $region55: #{tpu_custom_call.1} parent=47 // pred_region
          %329 = dma.done [#allocation7], 256
        $region56: #{tpu_custom_call.1} parent=47 // pred_fallthru
          _
        %s330 = sand.u32 %s25, 1
        %s331 = scalar_lea.sflag [#allocation4], %s330
        %s332 = sand.u32 %s155, 1
        %s333 = smul.addr %s332, 16
        %s334 = scalar_lea.vmem [#allocation8], %s333
        // Predicated region
        $region57: #{tpu_custom_call.1} parent=47 // pred_check
          %p335 = pneg %p168
        $region58: #{tpu_custom_call.1} parent=47 // pred_check_branch
          %337 = sbr.rel (%p335) target = $region60
        $region59: #{tpu_custom_call.1} parent=47 // pred_region
          %338 = dma.done %s331, 256
        $region60: #{tpu_custom_call.1} parent=47 // pred_fallthru
          _
        %s339 = sand.u32 %s25, 1
        %s340 = scalar_lea.sflag [#allocation4], %s339
        %s341 = sand.u32 %s45, 1
        %s342 = smul.addr %s341, 8
        %s343 = scalar_lea.vmem [#allocation3], %s342
        %p344 = pneg %p58
        %p345 = pneg %p55
        %p346 = pneg %p79
        %p347 = pneg %p76
        %p348 = pneg %p100
        %p349 = pneg %p97
        %p350 = pneg %p121
        %p351 = pneg %p118
        %p352 = pneg %p142
        %p353 = pneg %p139
        %s354 = sand.u32 %s25, 1
        %s355 = scalar_lea.sflag [#allocation4], %s354
        %s356 = sand.u32 %s155, 1
        %s357 = smul.addr %s356, 16
        %s358 = scalar_lea.vmem [#allocation8], %s357
        %p359 = pneg %p168
        %p360 = pneg %p165
        %p361 = scmp.lt.s32.totalorder %s30, 1
        %s362 = scalar_select %p361, %s30, 1
        %s363 = scalar_lea.vmem %s6, %s362
        %p364 = pneg %p194
        %p365 = pneg %p191
        %p366 = pneg %p222
        %p367 = pneg %p219
        %s368 = sand.u32 %s209, 1
        %s369 = scalar_lea.sflag [#allocation5], %s368
        %s370 = sand.u32 %s209, 1
        %s371 = smul.addr %s370, 16
        %s372 = scalar_lea.vmem [#allocation9], %s371
        %s373 = smul.u32 2, %s29
        %p374 = scmp.lt.s32.totalorder %s30, 1
        %s375 = scalar_select %p374, %s30, 1
        %s376 = scalar_lea.vmem %s6, %s375
        %s377 = smul.u32 2, %s29
        %p379 = scmp.eq.s32.totalorder %s30, 0
        // Predicated region
        $region61: #{tpu_custom_call.1} parent=47 // pred_check
          %p380 = pneg %p379
        $region62: #{tpu_custom_call.1} parent=47 // pred_check_branch
          %382 = sbr.rel (%p380) target = $region64
        $region63: #{tpu_custom_call.1} parent=47 // pred_region
          %v383 = vld [vmem:[%s321] sm:$0xf]
          %v384 = vld [vmem:[%s321 + $0x4] sm:$0xf]
          %v385 = vld [vmem:[#allocation6] sm:$0xf]
          %v386 = vld [vmem:[#allocation6 + $0x4] sm:$0xf]
          %v387 = vld [vmem:[#allocation6 + $0x8] sm:$0xf]
          %v388 = vld [vmem:[#allocation6 + $0xc] sm:$0xf]
          %v389 = vld [vmem:[%s2] sm:$0x1]
          %v391 = vlaneseq
          %v392 = vshrl.u32 %v391, 7
          %v393 = vsub.s32 0, %v392
          %v394 = vrot.slane %v389, %v393
          %v398 = vunpack.c.l.b16 %v383
          %v399 = vunpack.c.l.b16 %v384
          %v400 = vpack.c.b16 %v399, %v398
          %v405 = vunpack.c.l.b16 %v385
          %v406 = vunpack.c.l.b16 %v386
          %v407 = vunpack.c.l.b16 %v387
          %v408 = vunpack.c.l.b16 %v388
          %v409 = vpack.c.b16 %v406, %v405
          %v410 = vpack.c.b16 %v408, %v407
          %vm413 = vcmask 261120
          %v415 = vsel %vm413, %v400, 0
          %417 = vmatprep.subr.bf16.mxu0 0
          %418 = vmatpush1.bf16.msra.mxu0 %v409
          %419 = vmatprep.subr.bf16.mxu0 0
          %420 = vmatpush1.bf16.msra.mxu0 %v410
          %421 = vmatprep.subr.bf16.mxu0 0
          %422 = vmatpush1.bf16.msra.mxu0 0
          %423 = vmatprep.subr.bf16.mxu0 0
          %424 = vmatpush1.bf16.msra.mxu0 0
          %425 = vmatprep.subr.bf16.mxu0 0
          %426 = vmatpush1.bf16.msra.mxu0 0
          %427 = vmatprep.subr.bf16.mxu0 0
          %428 = vmatpush1.bf16.msra.mxu0 0
          %429 = vmatprep.subr.bf16.mxu0 0
          %430 = vmatpush1.bf16.msra.mxu0 0
          %431 = vmatprep.subr.bf16.mxu0 0
          %432 = vmatpush1.bf16.msra.mxu0 0
          %433 = vmatprep.subr.bf16.mxu0 0
          %434 = vmatpush1.bf16.msra.mxu0 0
          %435 = vmatprep.subr.bf16.mxu0 0
          %436 = vmatpush1.bf16.msra.mxu0 0
          %437 = vmatprep.subr.bf16.mxu0 0
          %438 = vmatpush1.bf16.msra.mxu0 0
          %439 = vmatprep.subr.bf16.mxu0 0
          %440 = vmatpush1.bf16.msra.mxu0 0
          %441 = vmatprep.subr.bf16.mxu0 0
          %442 = vmatpush1.bf16.msra.mxu0 0
          %443 = vmatprep.subr.bf16.mxu0 0
          %444 = vmatpush1.bf16.msra.mxu0 0
          %445 = vmatprep.subr.bf16.mxu0 0
          %446 = vmatpush1.bf16.msra.mxu0 0
          %447 = vmatprep.subr.bf16.mxu0 0
          %448 = vmatpush1.bf16.msra.mxu0 0
          %449 = vmatprep.mubr.bf16.mxu0 0
          %450 = vmatmul.mubr.bf16.gmra.mrb[0].mxu0 %v415
          %v451 = vpop.f32.mrb[0].mxu0
          %v452 = vadd.f32 %v394, %v451
          %v453 = vpop.f32.mrb[0].mxu0
          %v454 = vpop.f32.mrb[0].mxu0
          %v455 = vadd.f32 %v394, %v454
          %v456 = vpop.f32.mrb[0].mxu0
          %457 = vdwg.mxu0
          %v458 = vmul.f32 %v452, 0.5
          %v459 = vmul.f32 %v455, 0.5
          %v460 = vmul.f32 %v452, 0.70710677
          %v461 = vmul.f32 %v455, 0.70710677
          %v462 = verf.f32.pop %v460
          %v463 = verf.f32.pop %v461
          %v464 = vadd.f32 %v462, 1.0
          %v465 = vadd.f32 %v463, 1.0
          %v466 = vmul.f32 %v458, %v464
          %v467 = vmul.f32 %v459, %v465
          %v468 = vsel %vm413, %v466, 0.0
          %469 = vadd.xlane.f32.xlu0 %v468
          %v470 = vpop.xlane.xlu0 %469
          %v471 = vsel %vm413, %v467, 0.0
          %472 = vadd.xlane.f32.xlu0 %v471
          %v473 = vpop.xlane.xlu0 %472
          %v474 = vrcp.pop 32.0
          %v475 = vmul.f32 %v470, %v474
          %v476 = vmul.f32 %v473, %v474
          %v477 = vsub.f32 %v466, %v475
          %v478 = vsub.f32 %v467, %v476
          %v479 = vmul.f32 %v477, %v477
          %v480 = vmul.f32 %v478, %v478
          %v481 = vsel %vm413, %v479, 0.0
          %482 = vadd.xlane.f32.xlu0 %v481
          %v483 = vpop.xlane.xlu0 %482
          %v484 = vsel %vm413, %v480, 0.0
          %485 = vadd.xlane.f32.xlu0 %v484
          %v486 = vpop.xlane.xlu0 %485
          %v487 = vmul.f32 %v483, %v474
          %v488 = vmul.f32 %v486, %v474
          %v489 = vadd.f32 %v487, 1e-12
          %v490 = vadd.f32 %v488, 1e-12
          %v491 = vrsqrt.pop %v489
          %v492 = vrsqrt.pop %v490
          %v493 = vmul.f32 %v477, %v491
          %v494 = vmul.f32 %v478, %v492
          %v495 = vld [vmem:[%s3] sm:$0x1]
          %v497 = vlaneseq
          %v498 = vshrl.u32 %v497, 7
          %v499 = vsub.s32 0, %v498
          %v500 = vrot.slane %v495, %v499
          %v502 = vmul.f32 %v493, %v500
          %v503 = vmul.f32 %v494, %v500
          %v504 = vld [vmem:[%s4] sm:$0x1]
          %v506 = vlaneseq
          %v507 = vshrl.u32 %v506, 7
          %v508 = vsub.s32 0, %v507
          %v509 = vrot.slane %v504, %v508
          %v511 = vadd.f32 %v502, %v509
          %v512 = vadd.f32 %v503, %v509
          %v513 = vpack.c.bf16 %v512, %v511
          %514 = vst.msk [vmem:[#allocation2] sm:$0xff] %vm413, %v513
        $region64: #{tpu_custom_call.1} parent=47 // pred_fallthru
          _
        %v515 = vld [vmem:[#allocation2] sm:$0xff]
        %v516 = vld [vmem:[%s334] sm:$0xf]
        %v517 = vld [vmem:[%s334 + $0x4] sm:$0xf]
        %v518 = vld [vmem:[%s334 + $0x8] sm:$0xf]
        %v519 = vld [vmem:[%s334 + $0xc] sm:$0xf]
        %v520 = vld [vmem:[%s376] sm:$0x1]
        %v522 = vlaneseq
        %v523 = vshrl.u32 %v522, 7
        %v524 = vsub.s32 0, %v523
        %v525 = vrot.slane %v520, %v524
        %v531 = vunpack.c.l.b16 %v516
        %v532 = vunpack.c.l.b16 %v517
        %v533 = vunpack.c.l.b16 %v518
        %v534 = vunpack.c.l.b16 %v519
        %v535 = vpack.c.b16 %v532, %v531
        %v536 = vpack.c.b16 %v534, %v533
        %vm539 = vcmask 261120
        %v541 = vsel %vm539, %v515, 0
        %543 = vmatprep.subr.bf16.mxu0 0
        %544 = vmatpush1.bf16.msra.mxu0 %v535
        %545 = vmatprep.subr.bf16.mxu0 0
        %546 = vmatpush1.bf16.msra.mxu0 %v536
        %547 = vmatprep.subr.bf16.mxu0 0
        %548 = vmatpush1.bf16.msra.mxu0 0
        %549 = vmatprep.subr.bf16.mxu0 0
        %550 = vmatpush1.bf16.msra.mxu0 0
        %551 = vmatprep.subr.bf16.mxu0 0
        %552 = vmatpush1.bf16.msra.mxu0 0
        %553 = vmatprep.subr.bf16.mxu0 0
        %554 = vmatpush1.bf16.msra.mxu0 0
        %555 = vmatprep.subr.bf16.mxu0 0
        %556 = vmatpush1.bf16.msra.mxu0 0
        %557 = vmatprep.subr.bf16.mxu0 0
        %558 = vmatpush1.bf16.msra.mxu0 0
        %559 = vmatprep.subr.bf16.mxu0 0
        %560 = vmatpush1.bf16.msra.mxu0 0
        %561 = vmatprep.subr.bf16.mxu0 0
        %562 = vmatpush1.bf16.msra.mxu0 0
        %563 = vmatprep.subr.bf16.mxu0 0
        %564 = vmatpush1.bf16.msra.mxu0 0
        %565 = vmatprep.subr.bf16.mxu0 0
        %566 = vmatpush1.bf16.msra.mxu0 0
        %567 = vmatprep.subr.bf16.mxu0 0
        %568 = vmatpush1.bf16.msra.mxu0 0
        %569 = vmatprep.subr.bf16.mxu0 0
        %570 = vmatpush1.bf16.msra.mxu0 0
        %571 = vmatprep.subr.bf16.mxu0 0
        %572 = vmatpush1.bf16.msra.mxu0 0
        %573 = vmatprep.subr.bf16.mxu0 0
        %574 = vmatpush1.bf16.msra.mxu0 0
        %575 = vmatprep.mubr.bf16.mxu0 0
        %576 = vmatmul.mubr.bf16.gmra.mrb[0].mxu0 %v541
        %v577 = vpop.f32.mrb[0].mxu0
        %v578 = vadd.f32 %v525, %v577
        %v579 = vpop.f32.mrb[0].mxu0
        %v580 = vpop.f32.mrb[0].mxu0
        %v581 = vadd.f32 %v525, %v580
        %v582 = vpop.f32.mrb[0].mxu0
        %583 = vdwg.mxu0
        %584 = vst [vmem:[%s372] sm:$0xff] %v578
        %585 = vst [vmem:[%s372 + $0x8] sm:$0xff] %v581
        %s586 = sand.u32 %s209, 1
        %s587 = scalar_lea.sflag [#allocation5], %s586
        %s588 = sand.u32 %s209, 1
        %s589 = smul.addr %s588, 16
        %s590 = scalar_lea.vmem [#allocation9], %s589
        // Predicated region
        $region65: #{tpu_custom_call.1} parent=47 // pred_check
          %p591 = pneg %p219
        $region66: #{tpu_custom_call.1} parent=47 // pred_check_branch
          %593 = sbr.rel (%p591) target = $region68
        $region67: #{tpu_custom_call.1} parent=47 // pred_region
          %s594 = smul.u32 2, %s29
          %s596 = ssub.s32 256, 256
          %597 = vsyncadd %s587, %s596
          %s598 = smul.addr %s594, 2
          %s599 = sadd.s32 %s30, %s598
          %s600 = smul.addr %s599, 128
          %s601 = scalar_lea.hbm %s7, %s600
          %s602 = sshll.u32 %s590, 4
          %s603 = int_to_ptr.vmem [resolvable:$true] %s602
          %608 = dma.vmem_to_hbm [thread:$0]  %s603, 256, %s601, %s587, 128, 256, 8
        $region68: #{tpu_custom_call.1} parent=47 // pred_fallthru
          _
      $region48: #{tpu_custom_call.1} parent=5 // pred_fallthru
        _
      %p609 = scmp.le.s32.totalorder 2, %s20
      // Predicated region
      $region69: #{tpu_custom_call.1} parent=5 // pred_check
        %p610 = pneg %p609
      $region70: #{tpu_custom_call.1} parent=5 // pred_check_branch
        %612 = sbr.rel (%p610) target = $region72
      $region71: #{tpu_custom_call.1} parent=5 // pred_region
        %s613 = ssub.s32 %s20, 2
        // Predicated region
        $region73: #{tpu_custom_call.1} parent=71 // pred_check
          %p614 = pneg %p225
        $region74: #{tpu_custom_call.1} parent=71 // pred_check_branch
          %616 = sbr.rel (%p614) target = $region76
        $region75: #{tpu_custom_call.1} parent=71 // pred_region
          %s617 = sand.u32 %s210, 1
          %s618 = scalar_lea.sflag [#allocation5], %s617
          %s619 = sand.u32 %s210, 1
          %s620 = smul.addr %s619, 16
          %s621 = scalar_lea.vmem [#allocation9], %s620
          %622 = dma.done %s618, 256
        $region76: #{tpu_custom_call.1} parent=71 // pred_fallthru
          _
      $region72: #{tpu_custom_call.1} parent=5 // pred_fallthru
        _
    $region6: #{tpu_custom_call.1} parent=1 // loop_footer
      %s24 = sadd.s32 1, %s20
    $region7: #{tpu_custom_call.1} parent=1 // loop_footer_branch
      %19 = sbr.rel target = $region3
    $region8: #{tpu_custom_call.1} parent=1 // loop_exit
      _
    %623 = vsyncpa [#allocation4], 1
    %s624 = scalar_lea.sflag [#allocation4], 1
    %625 = vsyncpa %s624, 1
    %626 = vsyncpa [#allocation7], 1
    %627 = vsyncpa [#allocation5], 1
    %s628 = scalar_lea.sflag [#allocation5], 1
    %629 = vsyncpa %s628, 1

</llo_original>
